<compile_context>
chip_gen: v7x
topology: tpu7x:2x2x1
jax: 0.10.0
libtpu: 0.0.40
codegen_flags: <defaults>
</compile_context>

<pallas_src>
import functools

import jax
import jax.numpy as jnp
from jax import lax
from jax.experimental import pallas as pl
from jax.experimental.pallas import tpu as pltpu


def _bottleneck_kernel(x_ref, w1_ref, w2s_ref, w3_ref, bias_ref, mask_ref,
                       out_ref, *, W, GW):
  lane = x_ref.shape[1]
  x = x_ref[...]                                 # (C_in, lane) f32

  b1 = bias_ref[0:GW, 0:1]                       # (GW, 1)
  b2 = bias_ref[0:GW, 1:2]                       # (GW, 1)
  b3 = bias_ref[:, 2:3]                          # (C_out, 1)

  # ---- conv1 (1x1) + bn1 + relu (BN scale folded into w1; bf16 MXU) --------
  o1 = jnp.dot(w1_ref[...], x.astype(jnp.bfloat16),
               preferred_element_type=jnp.float32)
  o1 = jnp.maximum(o1 + b1, 0.0)                 # (GW, lane) f32

  # ---- conv2 (3x3, pad=1, stride=1) + bn2 + relu ---------------------------
  # One stacked matmul: P[t*GW+o, p] = sum_i w2[(dy,dx)][o,i] * o1[i,p].
  P = jnp.dot(w2s_ref[...], o1.astype(jnp.bfloat16),
              preferred_element_type=jnp.float32)          # (9*GW, lane) f32
  acc = jnp.zeros((GW, lane), dtype=jnp.float32)
  for t in range(9):
    dy, dx = t // 3, t % 3
    off = (dy - 1) * W + (dx - 1)                # source offset on flat lane axis
    p_t = P[t * GW:(t + 1) * GW, :]              # (GW, lane)
    if off != 0:
      # tap[p] = P_t[p + off]  (np.roll semantics: out[i] = in[i - shift]).
      p_t = pltpu.roll(p_t, shift=(-off) % lane, axis=1)
    if not (dy == 1 and dx == 1):                # center tap needs no mask
      p_t = p_t * mask_ref[t:t + 1, :]
    acc = acc + p_t
  o2 = jnp.maximum(acc + b2, 0.0)                # (GW, lane) f32

  # ---- conv3 (1x1) + bn3 ---------------------------------------------------
  o3 = jnp.dot(w3_ref[...], o2.astype(jnp.bfloat16),
               preferred_element_type=jnp.float32) + b3

  # ---- residual add (downsample=None) + relu; lane-dense full-width store --
  out_ref[...] = jnp.maximum(o3 + x, 0.0)


def _fold_bn(gamma, beta, mean, var, eps):
  scale = gamma / jnp.sqrt(var + eps)
  return scale, beta - mean * scale


def _choose_num_steps(N):
  """2 parallel steps on a 2-TensorCore chip (v7x); otherwise a single step."""
  try:
    kind = jax.devices()[0].device_kind.lower()
  except Exception:  # pragma: no cover
    kind = ""
  if "v7" in kind and N % 2 == 0:
    return 2
  return 1


def bottleneck_forward(x_nchw, conv1_w, bn1, conv2_w, bn2, conv3_w, bn3,
                       eps=1e-5, num_steps=None):
  """x_nchw: (N, C_in, H, W) f32.  conv*_w: PyTorch OIHW.  bn*: (gamma, beta, mean, var)."""
  N, C_in, H, W = x_nchw.shape
  GW = conv1_w.shape[0]
  C_out = conv3_w.shape[0]
  assert C_out == C_in, "downsample=None requires inplanes == planes * expansion"
  HW = H * W

  if num_steps is None:
    num_steps = _choose_num_steps(N)
  assert N % num_steps == 0
  ips = N // num_steps                           # images per grid step
  lane = ips * HW                                # lane width per step

  s1, b1 = _fold_bn(*bn1, eps)
  s2, b2 = _fold_bn(*bn2, eps)
  s3, b3 = _fold_bn(*bn3, eps)

  # Fold BN scales into conv weights; cast MXU operands to bf16 (wrapper-side).
  w1 = (conv1_w[:, :, 0, 0] * s1[:, None]).astype(jnp.bfloat16)        # (GW, C_in)
  w2_scaled = conv2_w * s2[:, None, None, None]                        # (O, I, 3, 3)
  w2s = (jnp.transpose(w2_scaled, (2, 3, 0, 1))                        # (3,3,O,I)
         .reshape(9 * GW, GW).astype(jnp.bfloat16))                    # (9*GW, GW)
  w3 = (conv3_w[:, :, 0, 0] * s3[:, None]).astype(jnp.bfloat16)        # (C_out, GW)

  # Pack the three (f32) bias vectors into a single small input.
  bias = jnp.zeros((C_out, 3), jnp.float32)
  bias = bias.at[:GW, 0].set(b1).at[:GW, 1].set(b2).at[:, 2].set(b3)

  # Per-tap boundary masks over the flat lane axis (tiled over images per step).
  pidx = jnp.arange(HW)
  hh, ww = pidx // W, pidx % W
  ones = jnp.ones((HW,), dtype=bool)
  row_m = [hh >= 1, ones, hh <= H - 2]           # dy = 0, 1, 2
  col_m = [ww >= 1, ones, ww <= W - 2]           # dx = 0, 1, 2
  masks = jnp.stack([(row_m[dy] & col_m[dx]).astype(jnp.float32)
                     for dy in range(3) for dx in range(3)])           # (9, HW)
  masks = jnp.tile(masks, (1, ips))                                    # (9, lane)

  # Channel-major with batch folded into the lane axis (one-time wrapper op).
  x_flat = jnp.transpose(x_nchw, (1, 0, 2, 3)).reshape(C_in, N * HW)

  kernel = functools.partial(_bottleneck_kernel, W=W, GW=GW)

  out = pl.pallas_call(
      kernel,
      out_shape=jax.ShapeDtypeStruct((C_out, N * HW), jnp.float32),
      grid_spec=pltpu.PrefetchScalarGridSpec(
          num_scalar_prefetch=0,
          grid=(num_steps,),
          in_specs=[
              pl.BlockSpec((C_in, lane), lambda s: (0, s)),
              pl.BlockSpec((GW, C_in), lambda s: (0, 0)),
              pl.BlockSpec((9 * GW, GW), lambda s: (0, 0)),
              pl.BlockSpec((C_out, GW), lambda s: (0, 0)),
              pl.BlockSpec((C_out, 3), lambda s: (0, 0)),
              pl.BlockSpec((9, lane), lambda s: (0, 0)),
          ],
          out_specs=pl.BlockSpec((C_out, lane), lambda s: (0, s)),
      ),
      compiler_params=pltpu.CompilerParams(
          dimension_semantics=("parallel",),
          vmem_limit_bytes=16 * 1024 * 1024,
      ),
  )(x_flat, w1, w2s, w3, bias, masks)

  return jnp.transpose(out.reshape(C_out, N, H, W), (1, 0, 2, 3))


def _reference(x, conv1_w, bn1, conv2_w, bn2, conv3_w, bn3, eps=1e-5):
  dn = ("NCHW", "OIHW", "NCHW")

  def bn_apply(o, params):
    gamma, beta, mean, var = params
    s = gamma / jnp.sqrt(var + eps)
    return o * s.reshape(1, -1, 1, 1) + (beta - mean * s).reshape(1, -1, 1, 1)

  o = lax.conv_general_dilated(x, conv1_w, (1, 1), "VALID", dimension_numbers=dn)
  o = jnp.maximum(bn_apply(o, bn1), 0.0)
  o = lax.conv_general_dilated(o, conv2_w, (1, 1), [(1, 1), (1, 1)],
                               dimension_numbers=dn)
  o = jnp.maximum(bn_apply(o, bn2), 0.0)
  o = lax.conv_general_dilated(o, conv3_w, (1, 1), "VALID", dimension_numbers=dn)
  o = bn_apply(o, bn3)
  return jnp.maximum(o + x, 0.0)


if __name__ == "__main__":
  # Module config (defaults): planes=4 -> group_width=4, expansion=4 -> C_out=16;
  # inplanes must equal planes*4=16 since downsample=None.
  N, H, W = 2, 16, 16
  planes = 4
  GW = planes            # int(planes * 64/64) * cardinality
  C_in = planes * 4      # 16
  C_out = planes * 4     # 16
  eps = 1e-5

  key = jax.random.PRNGKey(0)
  ks = jax.random.split(key, 8)

  x = jax.random.normal(ks[0], (N, C_in, H, W), jnp.float32)

  conv1_w = 0.1 * jax.random.normal(ks[1], (GW, C_in, 1, 1), jnp.float32)
  conv2_w = 0.1 * jax.random.normal(ks[2], (GW, GW, 3, 3), jnp.float32)
  conv3_w = 0.1 * jax.random.normal(ks[3], (C_out, GW, 1, 1), jnp.float32)

  def bn_params(k, C):
    kg, kb, km, kv = jax.random.split(k, 4)
    gamma = 1.0 + 0.1 * jax.random.normal(kg, (C,), jnp.float32)
    beta = 0.1 * jax.random.normal(kb, (C,), jnp.float32)
    mean = 0.1 * jax.random.normal(km, (C,), jnp.float32)
    var = jnp.abs(jax.random.normal(kv, (C,), jnp.float32)) + 0.5
    return gamma, beta, mean, var

  bn1 = bn_params(ks[4], GW)
  bn2 = bn_params(ks[5], GW)
  bn3 = bn_params(ks[6], C_out)

  out = bottleneck_forward(x, conv1_w, bn1, conv2_w, bn2, conv3_w, bn3, eps=eps)
  out = jax.block_until_ready(out)

  ref = _reference(x, conv1_w, bn1, conv2_w, bn2, conv3_w, bn3, eps=eps)
  assert out.shape == (N, C_out, H, W)
  err = float(jnp.max(jnp.abs(out - ref)))
  # bf16 MXU operands vs. f32 XLA reference: relaxed tolerance.
  assert err < 5e-2, f"max abs err {err}"

  # DropBlock2D layers are identity (dropblock_prob=0.0); avd=False; radix=1.
  print("KERNEL_OK")
</pallas_src>

<mosaic_0001>
module attributes {stable_mosaic.version = 11 : i64} {
  func.func @_bottleneck_kernel(%arg0: i32, %arg1: memref<16x512xf32, #tpu.memory_space<vmem>>, %arg2: memref<4x16xbf16, #tpu.memory_space<vmem>>, %arg3: memref<36x4xbf16, #tpu.memory_space<vmem>>, %arg4: memref<16x4xbf16, #tpu.memory_space<vmem>>, %arg5: memref<16x3xf32, #tpu.memory_space<vmem>>, %arg6: memref<9x512xf32, #tpu.memory_space<vmem>>, %arg7: memref<16x512xf32, #tpu.memory_space<vmem>>) attributes {dimension_semantics = [#tpu.dimension_semantics<parallel>], iteration_bounds = array<i64: 1>, scalar_prefetch = 0 : i64, scratch_operands = 0 : i64, tpu.core_type = #tpu.core_type<tc>, window_params = [{transform_indices = @transform_0, window_bounds = array<i64: 16, 512>}, {pipeline_mode = #tpu.pipeline_mode<synchronous>, transform_indices = @transform_1, window_bounds = array<i64: 4, 16>}, {pipeline_mode = #tpu.pipeline_mode<synchronous>, transform_indices = @transform_2, window_bounds = array<i64: 36, 4>}, {pipeline_mode = #tpu.pipeline_mode<synchronous>, transform_indices = @transform_3, window_bounds = array<i64: 16, 4>}, {pipeline_mode = #tpu.pipeline_mode<synchronous>, transform_indices = @transform_4, window_bounds = array<i64: 16, 3>}, {pipeline_mode = #tpu.pipeline_mode<synchronous>, transform_indices = @transform_5, window_bounds = array<i64: 9, 512>}, {transform_indices = @transform_6, window_bounds = array<i64: 16, 512>}]} {
    %c0 = arith.constant 0 : index
    %c0_0 = arith.constant 0 : index
    %0 = vector.load %arg1[%c0, %c0_0] : memref<16x512xf32, #tpu.memory_space<vmem>>, vector<16x512xf32>
    %c0_1 = arith.constant 0 : index
    %c0_2 = arith.constant 0 : index
    %1 = vector.load %arg5[%c0_1, %c0_2] : memref<16x3xf32, #tpu.memory_space<vmem>>, vector<4x1xf32>
    %c0_3 = arith.constant 0 : index
    %c1 = arith.constant 1 : index
    %2 = vector.load %arg5[%c0_3, %c1] : memref<16x3xf32, #tpu.memory_space<vmem>>, vector<4x1xf32>
    %c0_4 = arith.constant 0 : index
    %c2 = arith.constant 2 : index
    %3 = vector.load %arg5[%c0_4, %c2] : memref<16x3xf32, #tpu.memory_space<vmem>>, vector<16x1xf32>
    %c0_5 = arith.constant 0 : index
    %c0_6 = arith.constant 0 : index
    %4 = vector.load %arg2[%c0_5, %c0_6] : memref<4x16xbf16, #tpu.memory_space<vmem>>, vector<4x16xbf16>
    %5 = arith.truncf %0 : vector<16x512xf32> to vector<16x512xbf16>
    %cst = arith.constant dense<0.000000e+00> : vector<4x512xf32>
    %6 = tpu.matmul %4, %5, %cst {dimension_numbers = #tpu.dot_dimension_numbers<[1], [0], [0], [1], [0, 0, 1, 1], [], []>} : vector<4x16xbf16>, vector<16x512xbf16>, vector<4x512xf32> -> vector<4x512xf32>
    %7 = vector.broadcast %1 : vector<4x1xf32> to vector<4x512xf32>
    %8 = arith.addf %6, %7 : vector<4x512xf32>
    %cst_7 = arith.constant 0.000000e+00 : f32
    %9 = vector.broadcast %cst_7 : f32 to vector<4x512xf32>
    %10 = arith.maximumf %8, %9 : vector<4x512xf32>
    %c0_8 = arith.constant 0 : index
    %c0_9 = arith.constant 0 : index
    %11 = vector.load %arg3[%c0_8, %c0_9] : memref<36x4xbf16, #tpu.memory_space<vmem>>, vector<36x4xbf16>
    %12 = arith.truncf %10 : vector<4x512xf32> to vector<4x512xbf16>
    %cst_10 = arith.constant dense<0.000000e+00> : vector<36x512xf32>
    %13 = tpu.matmul %11, %12, %cst_10 {dimension_numbers = #tpu.dot_dimension_numbers<[1], [0], [0], [1], [0, 0, 1, 1], [], []>} : vector<36x4xbf16>, vector<4x512xbf16>, vector<36x512xf32> -> vector<36x512xf32>
    %cst_11 = arith.constant 0.000000e+00 : f32
    %14 = vector.broadcast %cst_11 : f32 to vector<4x512xf32>
    %15 = vector.extract_strided_slice %13 {offsets = [0, 0], sizes = [4, 512], strides = [1, 1]} : vector<36x512xf32> to vector<4x512xf32>
    %c17_i32 = arith.constant 17 : i32
    %16 = tpu.dynamic_rotate %15 by %c17_i32 dim 1 : vector<4x512xf32>, i32 -> vector<4x512xf32>
    %c0_12 = arith.constant 0 : index
    %c0_13 = arith.constant 0 : index
    %17 = vector.load %arg6[%c0_12, %c0_13] : memref<9x512xf32, #tpu.memory_space<vmem>>, vector<1x512xf32>
    %18 = vector.broadcast %17 : vector<1x512xf32> to vector<4x512xf32>
    %19 = arith.mulf %16, %18 : vector<4x512xf32>
    %20 = arith.addf %14, %19 : vector<4x512xf32>
    %21 = vector.extract_strided_slice %13 {offsets = [4, 0], sizes = [4, 512], strides = [1, 1]} : vector<36x512xf32> to vector<4x512xf32>
    %c16_i32 = arith.constant 16 : i32
    %22 = tpu.dynamic_rotate %21 by %c16_i32 dim 1 : vector<4x512xf32>, i32 -> vector<4x512xf32>
    %c1_14 = arith.constant 1 : index
    %c0_15 = arith.constant 0 : index
    %23 = vector.load %arg6[%c1_14, %c0_15] : memref<9x512xf32, #tpu.memory_space<vmem>>, vector<1x512xf32>
    %24 = vector.broadcast %23 : vector<1x512xf32> to vector<4x512xf32>
    %25 = arith.mulf %22, %24 : vector<4x512xf32>
    %26 = arith.addf %20, %25 : vector<4x512xf32>
    %27 = vector.extract_strided_slice %13 {offsets = [8, 0], sizes = [4, 512], strides = [1, 1]} : vector<36x512xf32> to vector<4x512xf32>
    %c15_i32 = arith.constant 15 : i32
    %28 = tpu.dynamic_rotate %27 by %c15_i32 dim 1 : vector<4x512xf32>, i32 -> vector<4x512xf32>
    %c2_16 = arith.constant 2 : index
    %c0_17 = arith.constant 0 : index
    %29 = vector.load %arg6[%c2_16, %c0_17] : memref<9x512xf32, #tpu.memory_space<vmem>>, vector<1x512xf32>
    %30 = vector.broadcast %29 : vector<1x512xf32> to vector<4x512xf32>
    %31 = arith.mulf %28, %30 : vector<4x512xf32>
    %32 = arith.addf %26, %31 : vector<4x512xf32>
    %33 = vector.extract_strided_slice %13 {offsets = [12, 0], sizes = [4, 512], strides = [1, 1]} : vector<36x512xf32> to vector<4x512xf32>
    %c1_i32 = arith.constant 1 : i32
    %34 = tpu.dynamic_rotate %33 by %c1_i32 dim 1 : vector<4x512xf32>, i32 -> vector<4x512xf32>
    %c3 = arith.constant 3 : index
    %c0_18 = arith.constant 0 : index
    %35 = vector.load %arg6[%c3, %c0_18] : memref<9x512xf32, #tpu.memory_space<vmem>>, vector<1x512xf32>
    %36 = vector.broadcast %35 : vector<1x512xf32> to vector<4x512xf32>
    %37 = arith.mulf %34, %36 : vector<4x512xf32>
    %38 = arith.addf %32, %37 : vector<4x512xf32>
    %39 = vector.extract_strided_slice %13 {offsets = [16, 0], sizes = [4, 512], strides = [1, 1]} : vector<36x512xf32> to vector<4x512xf32>
    %40 = arith.addf %38, %39 : vector<4x512xf32>
    %41 = vector.extract_strided_slice %13 {offsets = [20, 0], sizes = [4, 512], strides = [1, 1]} : vector<36x512xf32> to vector<4x512xf32>
    %c511_i32 = arith.constant 511 : i32
    %42 = tpu.dynamic_rotate %41 by %c511_i32 dim 1 : vector<4x512xf32>, i32 -> vector<4x512xf32>
    %c5 = arith.constant 5 : index
    %c0_19 = arith.constant 0 : index
    %43 = vector.load %arg6[%c5, %c0_19] : memref<9x512xf32, #tpu.memory_space<vmem>>, vector<1x512xf32>
    %44 = vector.broadcast %43 : vector<1x512xf32> to vector<4x512xf32>
    %45 = arith.mulf %42, %44 : vector<4x512xf32>
    %46 = arith.addf %40, %45 : vector<4x512xf32>
    %47 = vector.extract_strided_slice %13 {offsets = [24, 0], sizes = [4, 512], strides = [1, 1]} : vector<36x512xf32> to vector<4x512xf32>
    %c497_i32 = arith.constant 497 : i32
    %48 = tpu.dynamic_rotate %47 by %c497_i32 dim 1 : vector<4x512xf32>, i32 -> vector<4x512xf32>
    %c6 = arith.constant 6 : index
    %c0_20 = arith.constant 0 : index
    %49 = vector.load %arg6[%c6, %c0_20] : memref<9x512xf32, #tpu.memory_space<vmem>>, vector<1x512xf32>
    %50 = vector.broadcast %49 : vector<1x512xf32> to vector<4x512xf32>
    %51 = arith.mulf %48, %50 : vector<4x512xf32>
    %52 = arith.addf %46, %51 : vector<4x512xf32>
    %53 = vector.extract_strided_slice %13 {offsets = [28, 0], sizes = [4, 512], strides = [1, 1]} : vector<36x512xf32> to vector<4x512xf32>
    %c496_i32 = arith.constant 496 : i32
    %54 = tpu.dynamic_rotate %53 by %c496_i32 dim 1 : vector<4x512xf32>, i32 -> vector<4x512xf32>
    %c7 = arith.constant 7 : index
    %c0_21 = arith.constant 0 : index
    %55 = vector.load %arg6[%c7, %c0_21] : memref<9x512xf32, #tpu.memory_space<vmem>>, vector<1x512xf32>
    %56 = vector.broadcast %55 : vector<1x512xf32> to vector<4x512xf32>
    %57 = arith.mulf %54, %56 : vector<4x512xf32>
    %58 = arith.addf %52, %57 : vector<4x512xf32>
    %59 = vector.extract_strided_slice %13 {offsets = [32, 0], sizes = [4, 512], strides = [1, 1]} : vector<36x512xf32> to vector<4x512xf32>
    %c495_i32 = arith.constant 495 : i32
    %60 = tpu.dynamic_rotate %59 by %c495_i32 dim 1 : vector<4x512xf32>, i32 -> vector<4x512xf32>
    %c8 = arith.constant 8 : index
    %c0_22 = arith.constant 0 : index
    %61 = vector.load %arg6[%c8, %c0_22] : memref<9x512xf32, #tpu.memory_space<vmem>>, vector<1x512xf32>
    %62 = vector.broadcast %61 : vector<1x512xf32> to vector<4x512xf32>
    %63 = arith.mulf %60, %62 : vector<4x512xf32>
    %64 = arith.addf %58, %63 : vector<4x512xf32>
    %65 = vector.broadcast %2 : vector<4x1xf32> to vector<4x512xf32>
    %66 = arith.addf %64, %65 : vector<4x512xf32>
    %cst_23 = arith.constant 0.000000e+00 : f32
    %67 = vector.broadcast %cst_23 : f32 to vector<4x512xf32>
    %68 = arith.maximumf %66, %67 : vector<4x512xf32>
    %c0_24 = arith.constant 0 : index
    %c0_25 = arith.constant 0 : index
    %69 = vector.load %arg4[%c0_24, %c0_25] : memref<16x4xbf16, #tpu.memory_space<vmem>>, vector<16x4xbf16>
    %70 = arith.truncf %68 : vector<4x512xf32> to vector<4x512xbf16>
    %cst_26 = arith.constant dense<0.000000e+00> : vector<16x512xf32>
    %71 = tpu.matmul %69, %70, %cst_26 {dimension_numbers = #tpu.dot_dimension_numbers<[1], [0], [0], [1], [0, 0, 1, 1], [], []>} : vector<16x4xbf16>, vector<4x512xbf16>, vector<16x512xf32> -> vector<16x512xf32>
    %72 = vector.broadcast %3 : vector<16x1xf32> to vector<16x512xf32>
    %73 = arith.addf %71, %72 : vector<16x512xf32>
    %74 = arith.addf %73, %0 : vector<16x512xf32>
    %cst_27 = arith.constant 0.000000e+00 : f32
    %75 = vector.broadcast %cst_27 : f32 to vector<16x512xf32>
    %76 = arith.maximumf %74, %75 : vector<16x512xf32>
    %c0_28 = arith.constant 0 : index
    %c0_29 = arith.constant 0 : index
    %77 = vector.load %arg7[%c0_28, %c0_29] : memref<16x512xf32, #tpu.memory_space<vmem>>, vector<16x512xf32>
    tpu.vector_store %arg7[%c0_28, %c0_29], %76 {strides = array<i32>} : memref<16x512xf32, #tpu.memory_space<vmem>>, vector<16x512xf32>,
    return
  }
  func.func @transform_0(%arg0: i32) -> (i32, i32) {
    %c0_i32 = arith.constant 0 : i32
    %c0_i32_0 = arith.constant 0 : i32
    return %c0_i32, %arg0 : i32, i32
  }
  func.func @transform_1(%arg0: i32) -> (i32, i32) {
    %c0_i32 = arith.constant 0 : i32
    %c0_i32_0 = arith.constant 0 : i32
    %c0_i32_1 = arith.constant 0 : i32
    return %c0_i32, %c0_i32_0 : i32, i32
  }
  func.func @transform_2(%arg0: i32) -> (i32, i32) {
    %c0_i32 = arith.constant 0 : i32
    %c0_i32_0 = arith.constant 0 : i32
    %c0_i32_1 = arith.constant 0 : i32
    return %c0_i32, %c0_i32_0 : i32, i32
  }
  func.func @transform_3(%arg0: i32) -> (i32, i32) {
    %c0_i32 = arith.constant 0 : i32
    %c0_i32_0 = arith.constant 0 : i32
    %c0_i32_1 = arith.constant 0 : i32
    return %c0_i32, %c0_i32_0 : i32, i32
  }
  func.func @transform_4(%arg0: i32) -> (i32, i32) {
    %c0_i32 = arith.constant 0 : i32
    %c0_i32_0 = arith.constant 0 : i32
    %c0_i32_1 = arith.constant 0 : i32
    return %c0_i32, %c0_i32_0 : i32, i32
  }
  func.func @transform_5(%arg0: i32) -> (i32, i32) {
    %c0_i32 = arith.constant 0 : i32
    %c0_i32_0 = arith.constant 0 : i32
    %c0_i32_1 = arith.constant 0 : i32
    return %c0_i32, %c0_i32_0 : i32, i32
  }
  func.func @transform_6(%arg0: i32) -> (i32, i32) {
    %c0_i32 = arith.constant 0 : i32
    %c0_i32_0 = arith.constant 0 : i32
    return %c0_i32, %arg0 : i32, i32
  }
}

</mosaic_0001>

<llo_original>
// kernel: tpu_custom_call.1
$region0: #{tpu_custom_call.1}
  #allocation0 [shape = 'u32[]', space=smem, size = 0x4, offset = 0x4, fixed_abs, tag = 'smem constant byte address 0x4 - core index']
  #allocation1 [shape = 'u32[144,128]{1,0:T(1,128)}', space=vmem, size = 0x12000, scoped, tag = 'internal scratch']
  %s0 = inlined_call_operand.hbm [shape: f32[16,512], index: 0, kind: input, shape index: {}]
  %s1 = inlined_call_operand.vmem [shape: bf16[4,16], index: 1, kind: input, shape index: {}]
  %s2 = inlined_call_operand.vmem [shape: bf16[36,4], index: 2, kind: input, shape index: {}]
  %s3 = inlined_call_operand.vmem [shape: bf16[16,4], index: 3, kind: input, shape index: {}]
  %s4 = inlined_call_operand.vmem [shape: f32[16,3], index: 4, kind: input, shape index: {}]
  %s5 = inlined_call_operand.vmem [shape: f32[9,512], index: 5, kind: input, shape index: {}]
  %s6 = inlined_call_operand.hbm [shape: f32[16,512], index: 6, kind: output, shape index: {}]
  %s7 = sld [smem:[#allocation0]]
  $region38: #{tpu_custom_call.1} parent=0
    _
  %s9 = ssub.s32 1, %s7
  %s10 = scalar_select 0, %s9, %s7
  $region1: #{tpu_custom_call.1} parent=0
    #allocation2 [shape = 'u8[32768]{0}', space=vmem, size = 0x8000, scoped, tag = 'input window, operand 0, single buffered']
    #allocation3 [shape = 's32[1]{0}', space=sflag, size = 0x4, scoped, tag = 'scoped memory for tpu_custom_call.1']
    #allocation4 [shape = 's32[1]{0}', space=sflag, size = 0x4, scoped, tag = 'scoped memory for tpu_custom_call.1']
    #allocation5 [shape = 'u8[32768]{0}', space=vmem, size = 0x8000, scoped, tag = 'output window, operand 0, single buffered']
    %11 = vsyncpa [#allocation3], 0
    %12 = vsyncpa [#allocation4], 0
    // Predicated region
    $region2: #{tpu_custom_call.1} parent=1 // pred_check
      _
    $region3: #{tpu_custom_call.1} parent=1 // pred_check_branch
      %14 = sbr.rel (0) target = $region5
    $region4: #{tpu_custom_call.1} parent=1 // pred_region
      %s16 = ssub.s32 1024, 1024
      %17 = vsyncadd [#allocation3], %s16
      %s18 = sshll.u32 [#allocation2], 4
      %s19 = int_to_ptr.vmem [resolvable:$true] %s18
      %24 = dma.hbm_to_vmem [thread:$0]  %s0, 1024, %s19, [#allocation3], 512, 512, 32
    $region5: #{tpu_custom_call.1} parent=1 // pred_fallthru
      _
    // Predicated region
    $region6: #{tpu_custom_call.1} parent=1 // pred_check
      _
    $region7: #{tpu_custom_call.1} parent=1 // pred_check_branch
      %26 = sbr.rel (0) target = $region9
    $region8: #{tpu_custom_call.1} parent=1 // pred_region
      _
    $region9: #{tpu_custom_call.1} parent=1 // pred_fallthru
      _
    // Predicated region
    $region10: #{tpu_custom_call.1} parent=1 // pred_check
      _
    $region11: #{tpu_custom_call.1} parent=1 // pred_check_branch
      %28 = sbr.rel (0) target = $region13
    $region12: #{tpu_custom_call.1} parent=1 // pred_region
      _
    $region13: #{tpu_custom_call.1} parent=1 // pred_fallthru
      _
    // Predicated region
    $region14: #{tpu_custom_call.1} parent=1 // pred_check
      _
    $region15: #{tpu_custom_call.1} parent=1 // pred_check_branch
      %30 = sbr.rel (0) target = $region17
    $region16: #{tpu_custom_call.1} parent=1 // pred_region
      _
    $region17: #{tpu_custom_call.1} parent=1 // pred_fallthru
      _
    // Predicated region
    $region18: #{tpu_custom_call.1} parent=1 // pred_check
      _
    $region19: #{tpu_custom_call.1} parent=1 // pred_check_branch
      %32 = sbr.rel (0) target = $region21
    $region20: #{tpu_custom_call.1} parent=1 // pred_region
      _
    $region21: #{tpu_custom_call.1} parent=1 // pred_fallthru
      _
    // Predicated region
    $region22: #{tpu_custom_call.1} parent=1 // pred_check
      _
    $region23: #{tpu_custom_call.1} parent=1 // pred_check_branch
      %34 = sbr.rel (0) target = $region25
    $region24: #{tpu_custom_call.1} parent=1 // pred_region
      _
    $region25: #{tpu_custom_call.1} parent=1 // pred_fallthru
      _
    // Predicated region
    $region26: #{tpu_custom_call.1} parent=1 // pred_check
      _
    $region27: #{tpu_custom_call.1} parent=1 // pred_check_branch
      %36 = sbr.rel (0) target = $region29
    $region28: #{tpu_custom_call.1} parent=1 // pred_region
      %37 = dma.done [#allocation3], 1024
    $region29: #{tpu_custom_call.1} parent=1 // pred_fallthru
      _
    %v39 = vld [vmem:[#allocation2] sm:$0xff]
    %v40 = vld [vmem:[#allocation2 + $0x8] sm:$0xff]
    %v41 = vld [vmem:[#allocation2 + $0x10] sm:$0xff]
    %v42 = vld [vmem:[#allocation2 + $0x18] sm:$0xff]
    %v43 = vld [vmem:[#allocation2 + $0x20] sm:$0xff]
    %v44 = vld [vmem:[#allocation2 + $0x28] sm:$0xff]
    %v45 = vld [vmem:[#allocation2 + $0x30] sm:$0xff]
    %v46 = vld [vmem:[#allocation2 + $0x38] sm:$0xff]
    %v47 = vld [vmem:[%s4] sm:$0xf]
    %v48 = vld [vmem:[%s4] sm:$0xff]
    %v49 = vld [vmem:[%s4 + $0x8] sm:$0xff]
    %v50 = vld [vmem:[%s1] sm:$0x3]
    %v51 = vpack.c.bf16 %v43, %v39
    %v52 = vpack.c.bf16 %v44, %v40
    %v53 = vpack.c.bf16 %v45, %v41
    %v54 = vpack.c.bf16 %v46, %v42
    %56 = vset.pattern.permute.xlu0 0
    %57 = vperm.xlu0 %56, %v47
    %v58 = vpop.permute.xlu0 %57
    %vm60 = vcmask 130048
    %v62 = vsel %vm60, %v50, 0
    %64 = vmatprep.subr.bf16.mxu0 %v52
    %65 = vmatpush1.bf16.msra.mxu0 %v51
    %66 = vmatprep.subr.bf16.mxu0 0
    %67 = vmatpush1.bf16.msra.mxu0 0
    %68 = vmatprep.subr.bf16.mxu0 0
    %69 = vmatpush1.bf16.msra.mxu0 0
    %70 = vmatprep.subr.bf16.mxu0 0
    %71 = vmatpush1.bf16.msra.mxu0 0
    %72 = vmatprep.subr.bf16.mxu0 0
    %73 = vmatpush1.bf16.msra.mxu0 0
    %74 = vmatprep.subr.bf16.mxu0 0
    %75 = vmatpush1.bf16.msra.mxu0 0
    %76 = vmatprep.subr.bf16.mxu0 0
    %77 = vmatpush1.bf16.msra.mxu0 0
    %78 = vmatprep.subr.bf16.mxu0 0
    %79 = vmatpush1.bf16.msra.mxu0 0
    %80 = vmatprep.subr.bf16.mxu0 0
    %81 = vmatpush1.bf16.msra.mxu0 0
    %82 = vmatprep.subr.bf16.mxu0 0
    %83 = vmatpush1.bf16.msra.mxu0 0
    %84 = vmatprep.subr.bf16.mxu0 0
    %85 = vmatpush1.bf16.msra.mxu0 0
    %86 = vmatprep.subr.bf16.mxu0 0
    %87 = vmatpush1.bf16.msra.mxu0 0
    %88 = vmatprep.subr.bf16.mxu0 0
    %89 = vmatpush1.bf16.msra.mxu0 0
    %90 = vmatprep.subr.bf16.mxu0 0
    %91 = vmatpush1.bf16.msra.mxu0 0
    %92 = vmatprep.subr.bf16.mxu0 0
    %93 = vmatpush1.bf16.msra.mxu0 0
    %94 = vmatprep.subr.bf16.mxu0 0
    %95 = vmatpush1.bf16.msra.mxu0 0
    %96 = vmatprep.mubr.bf16.mxu0 0
    %97 = vmatmul.mubr.bf16.gmra.mrb[0].mxu0 %v62
    %v98 = vpop.f32.mrb[0].mxu0
    %v99 = vadd.f32 %v58, %v98
    %v100 = vpop.f32.mrb[0].mxu0
    %v101 = vadd.f32 %v58, %v100
    %v102 = vpop.f32.mrb[0].mxu0
    %v103 = vpop.f32.mrb[0].mxu0
    %104 = vdwg.mxu0
    %105 = vmatprep.subr.bf16.mxu0 %v54
    %106 = vmatpush1.bf16.msra.mxu0 %v53
    %107 = vmatprep.subr.bf16.mxu0 0
    %108 = vmatpush1.bf16.msra.mxu0 0
    %109 = vmatprep.subr.bf16.mxu0 0
    %110 = vmatpush1.bf16.msra.mxu0 0
    %111 = vmatprep.subr.bf16.mxu0 0
    %112 = vmatpush1.bf16.msra.mxu0 0
    %113 = vmatprep.subr.bf16.mxu0 0
    %114 = vmatpush1.bf16.msra.mxu0 0
    %115 = vmatprep.subr.bf16.mxu0 0
    %116 = vmatpush1.bf16.msra.mxu0 0
    %117 = vmatprep.subr.bf16.mxu0 0
    %118 = vmatpush1.bf16.msra.mxu0 0
    %119 = vmatprep.subr.bf16.mxu0 0
    %120 = vmatpush1.bf16.msra.mxu0 0
    %121 = vmatprep.subr.bf16.mxu0 0
    %122 = vmatpush1.bf16.msra.mxu0 0
    %123 = vmatprep.subr.bf16.mxu0 0
    %124 = vmatpush1.bf16.msra.mxu0 0
    %125 = vmatprep.subr.bf16.mxu0 0
    %126 = vmatpush1.bf16.msra.mxu0 0
    %127 = vmatprep.subr.bf16.mxu0 0
    %128 = vmatpush1.bf16.msra.mxu0 0
    %129 = vmatprep.subr.bf16.mxu0 0
    %130 = vmatpush1.bf16.msra.mxu0 0
    %131 = vmatprep.subr.bf16.mxu0 0
    %132 = vmatpush1.bf16.msra.mxu0 0
    %133 = vmatprep.subr.bf16.mxu0 0
    %134 = vmatpush1.bf16.msra.mxu0 0
    %135 = vmatprep.subr.bf16.mxu0 0
    %136 = vmatpush1.bf16.msra.mxu0 0
    %137 = vmatprep.mubr.bf16.mxu0 0
    %138 = vmatmul.mubr.bf16.gmra.mrb[0].mxu0 %v62
    %v139 = vpop.f32.mrb[0].mxu0
    %v140 = vadd.f32 %v58, %v139
    %v141 = vpop.f32.mrb[0].mxu0
    %v142 = vadd.f32 %v58, %v141
    %v143 = vpop.f32.mrb[0].mxu0
    %v144 = vpop.f32.mrb[0].mxu0
    %145 = vdwg.mxu0
    %v146 = vmax.f32 %v99, 0.0
    %v147 = vmax.f32 %v101, 0.0
    %v148 = vmax.f32 %v140, 0.0
    %v149 = vmax.f32 %v142, 0.0
    %v150 = vld [vmem:[%s2] sm:$0xf]
    %v151 = vld [vmem:[%s2 + $0x4] sm:$0xf]
    %v152 = vld [vmem:[%s2 + $0x8] sm:$0xf]
    %v153 = vld [vmem:[%s2 + $0xc] sm:$0xf]
    %v154 = vld [vmem:[%s2 + $0x10] sm:$0x3]
    %v155 = vpack.c.bf16 %v146, %v146
    %v156 = vpack.c.bf16 %v147, %v147
    %v157 = vpack.c.bf16 %v148, %v148
    %v158 = vpack.c.bf16 %v149, %v149
    %v164 = vunpack.c.l.b16 %v150
    %v165 = vunpack.c.l.b16 %v151
    %v166 = vunpack.c.l.b16 %v152
    %v167 = vunpack.c.l.b16 %v153
    %v168 = vunpack.c.l.b16 %v154
    %v169 = vpack.c.b16 %v165, %v164
    %v170 = vpack.c.b16 %v167, %v166
    %v171 = vpack.c.b16 %v168, %v168
    %vm172 = vcmask 31744
    %v174 = vsel %vm172, %v169, 0
    %v177 = vsel %vm172, %v170, 0
    %v180 = vsel %vm172, %v171, 0
    %vm182 = vcmask 1041408
    %v184 = vsel %vm182, %v155, 0
    %v187 = vsel %vm182, %v156, 0
    %v190 = vsel %vm182, %v157, 0
    %v193 = vsel %vm182, %v158, 0
    %195 = vmatprep.subr.bf16.mxu0 %v187
    %196 = vmatpush1.bf16.msra.mxu0 %v184
    %197 = vmatprep.subr.bf16.mxu0 0
    %198 = vmatpush1.bf16.msra.mxu0 0
    %199 = vmatprep.subr.bf16.mxu0 0
    %200 = vmatpush1.bf16.msra.mxu0 0
    %201 = vmatprep.subr.bf16.mxu0 0
    %202 = vmatpush1.bf16.msra.mxu0 0
    %203 = vmatprep.subr.bf16.mxu0 0
    %204 = vmatpush1.bf16.msra.mxu0 0
    %205 = vmatprep.subr.bf16.mxu0 0
    %206 = vmatpush1.bf16.msra.mxu0 0
    %207 = vmatprep.subr.bf16.mxu0 0
    %208 = vmatpush1.bf16.msra.mxu0 0
    %209 = vmatprep.subr.bf16.mxu0 0
    %210 = vmatpush1.bf16.msra.mxu0 0
    %211 = vmatprep.subr.bf16.mxu0 0
    %212 = vmatpush1.bf16.msra.mxu0 0
    %213 = vmatprep.subr.bf16.mxu0 0
    %214 = vmatpush1.bf16.msra.mxu0 0
    %215 = vmatprep.subr.bf16.mxu0 0
    %216 = vmatpush1.bf16.msra.mxu0 0
    %217 = vmatprep.subr.bf16.mxu0 0
    %218 = vmatpush1.bf16.msra.mxu0 0
    %219 = vmatprep.subr.bf16.mxu0 0
    %220 = vmatpush1.bf16.msra.mxu0 0
    %221 = vmatprep.subr.bf16.mxu0 0
    %222 = vmatpush1.bf16.msra.mxu0 0
    %223 = vmatprep.subr.bf16.mxu0 0
    %224 = vmatpush1.bf16.msra.mxu0 0
    %225 = vmatprep.subr.bf16.mxu0 0
    %226 = vmatpush1.bf16.msra.mxu0 0
    %227 = vmatprep.mubr.bf16.mxu0 0
    %228 = vmatmul.mubr.bf16.gmra.mrb[0].mxu0 %v174
    %v229 = vpop.f32.mrb[0].mxu0
    %v230 = vadd.f32 0.0, %v229
    %v231 = vpop.f32.mrb[0].mxu0
    %v232 = vadd.f32 0.0, %v231
    %v233 = vpop.f32.mrb[0].mxu0
    %v234 = vadd.f32 0.0, %v233
    %v235 = vpop.f32.mrb[0].mxu0
    %v236 = vadd.f32 0.0, %v235
    %237 = vmatprep.mubr.bf16.mxu0 0
    %238 = vmatmul.mubr.bf16.gmra.mrb[0].mxu0 %v177
    %v239 = vpop.f32.mrb[0].mxu0
    %v240 = vadd.f32 0.0, %v239
    %v241 = vpop.f32.mrb[0].mxu0
    %v242 = vadd.f32 0.0, %v241
    %v243 = vpop.f32.mrb[0].mxu0
    %v244 = vadd.f32 0.0, %v243
    %v245 = vpop.f32.mrb[0].mxu0
    %v246 = vadd.f32 0.0, %v245
    %247 = vmatprep.mubr.bf16.mxu0 0
    %248 = vmatmul.mubr.bf16.gmra.mrb[0].mxu0 %v180
    %v249 = vpop.f32.mrb[0].mxu0
    %v250 = vadd.f32 0.0, %v249
    %v251 = vpop.f32.mrb[0].mxu0
    %v252 = vadd.f32 0.0, %v251
    %v253 = vpop.f32.mrb[0].mxu0
    %v254 = vpop.f32.mrb[0].mxu0
    %255 = vdwg.mxu0
    %256 = vmatprep.subr.bf16.mxu0 %v193
    %257 = vmatpush1.bf16.msra.mxu0 %v190
    %258 = vmatprep.subr.bf16.mxu0 0
    %259 = vmatpush1.bf16.msra.mxu0 0
    %260 = vmatprep.subr.bf16.mxu0 0
    %261 = vmatpush1.bf16.msra.mxu0 0
    %262 = vmatprep.subr.bf16.mxu0 0
    %263 = vmatpush1.bf16.msra.mxu0 0
    %264 = vmatprep.subr.bf16.mxu0 0
    %265 = vmatpush1.bf16.msra.mxu0 0
    %266 = vmatprep.subr.bf16.mxu0 0
    %267 = vmatpush1.bf16.msra.mxu0 0
    %268 = vmatprep.subr.bf16.mxu0 0
    %269 = vmatpush1.bf16.msra.mxu0 0
    %270 = vmatprep.subr.bf16.mxu0 0
    %271 = vmatpush1.bf16.msra.mxu0 0
    %272 = vmatprep.subr.bf16.mxu0 0
    %273 = vmatpush1.bf16.msra.mxu0 0
    %274 = vmatprep.subr.bf16.mxu0 0
    %275 = vmatpush1.bf16.msra.mxu0 0
    %276 = vmatprep.subr.bf16.mxu0 0
    %277 = vmatpush1.bf16.msra.mxu0 0
    %278 = vmatprep.subr.bf16.mxu0 0
    %279 = vmatpush1.bf16.msra.mxu0 0
    %280 = vmatprep.subr.bf16.mxu0 0
    %281 = vmatpush1.bf16.msra.mxu0 0
    %282 = vmatprep.subr.bf16.mxu0 0
    %283 = vmatpush1.bf16.msra.mxu0 0
    %284 = vmatprep.subr.bf16.mxu0 0
    %285 = vmatpush1.bf16.msra.mxu0 0
    %286 = vmatprep.subr.bf16.mxu0 0
    %287 = vmatpush1.bf16.msra.mxu0 0
    %288 = vmatprep.mubr.bf16.mxu0 0
    %289 = vmatmul.mubr.bf16.gmra.mrb[0].mxu0 %v174
    %v290 = vpop.f32.mrb[0].mxu0
    %v291 = vadd.f32 0.0, %v290
    %v292 = vpop.f32.mrb[0].mxu0
    %v293 = vadd.f32 0.0, %v292
    %v294 = vpop.f32.mrb[0].mxu0
    %v295 = vadd.f32 0.0, %v294
    %v296 = vpop.f32.mrb[0].mxu0
    %v297 = vadd.f32 0.0, %v296
    %298 = vmatprep.mubr.bf16.mxu0 0
    %299 = vmatmul.mubr.bf16.gmra.mrb[0].mxu0 %v177
    %v300 = vpop.f32.mrb[0].mxu0
    %v301 = vadd.f32 0.0, %v300
    %v302 = vpop.f32.mrb[0].mxu0
    %v303 = vadd.f32 0.0, %v302
    %v304 = vpop.f32.mrb[0].mxu0
    %v305 = vadd.f32 0.0, %v304
    %v306 = vpop.f32.mrb[0].mxu0
    %v307 = vadd.f32 0.0, %v306
    %308 = vmatprep.mubr.bf16.mxu0 0
    %309 = vmatmul.mubr.bf16.gmra.mrb[0].mxu0 %v180
    %v310 = vpop.f32.mrb[0].mxu0
    %v311 = vadd.f32 0.0, %v310
    %v312 = vpop.f32.mrb[0].mxu0
    %v313 = vadd.f32 0.0, %v312
    %v314 = vpop.f32.mrb[0].mxu0
    %v315 = vpop.f32.mrb[0].mxu0
    %316 = vdwg.mxu0
    %317 = vrot.lane.b32.xlu0 %v230, 17
    %v318 = vpop.permute.xlu0 %317
    %319 = vrot.lane.b32.xlu0 %v232, 17
    %v320 = vpop.permute.xlu0 %319
    %321 = vrot.lane.b32.xlu0 %v291, 17
    %v322 = vpop.permute.xlu0 %321
    %323 = vrot.lane.b32.xlu0 %v293, 17
    %v324 = vpop.permute.xlu0 %323
    %v325 = vlaneseq
    %v326 = vand.u32 %v325, 127
    %vm327 = vcmp.lt.s32.totalorder %v326, 17
    %v328 = vsel %vm327, %v322, %v324
    %v329 = vsel %vm327, %v320, %v322
    %v330 = vsel %vm327, %v318, %v320
    %v331 = vsel %vm327, %v324, %v318
    %v332 = vld [vmem:[%s5] ss:$8 sm:$0xf]
    %v334 = vlaneseq
    %v335 = vshrl.u32 %v334, 7
    %v336 = vsub.s32 0, %v335
    %v337 = vrot.slane %v332, %v336
    %v338 = vlaneseq
    %v339 = vshrl.u32 %v338, 7
    %v340 = vsub.s32 1, %v339
    %v341 = vrot.slane %v332, %v340
    %v342 = vlaneseq
    %v343 = vshrl.u32 %v342, 7
    %v344 = vsub.s32 2, %v343
    %v345 = vrot.slane %v332, %v344
    %v346 = vlaneseq
    %v347 = vshrl.u32 %v346, 7
    %v348 = vsub.s32 3, %v347
    %v349 = vrot.slane %v332, %v348
    %v354 = vmul.f32 %v331, %v337
    %v355 = vmul.f32 %v330, %v341
    %v356 = vmul.f32 %v329, %v345
    %v357 = vmul.f32 %v328, %v349
    %v358 = vadd.f32 %v354, 0.0
    %v359 = vadd.f32 %v355, 0.0
    %v360 = vadd.f32 %v356, 0.0
    %v361 = vadd.f32 %v357, 0.0
    %v366 = vrot.slane %v230, 4
    %v367 = vrot.slane %v232, 4
    %v368 = vrot.slane %v291, 4
    %v369 = vrot.slane %v293, 4
    %374 = vrot.lane.b32.xlu0 %v366, 16
    %v375 = vpop.permute.xlu0 %374
    %376 = vrot.lane.b32.xlu0 %v367, 16
    %v377 = vpop.permute.xlu0 %376
    %378 = vrot.lane.b32.xlu0 %v368, 16
    %v379 = vpop.permute.xlu0 %378
    %380 = vrot.lane.b32.xlu0 %v369, 16
    %v381 = vpop.permute.xlu0 %380
    %vm382 = vcmp.lt.s32.totalorder %v326, 16
    %v383 = vsel %vm382, %v379, %v381
    %v384 = vsel %vm382, %v377, %v379
    %v385 = vsel %vm382, %v375, %v377
    %v386 = vsel %vm382, %v381, %v375
    %s387 = scalar_lea.vmem %s5, 1
    %v388 = vld [vmem:[%s387] ss:$8 sm:$0xf]
    %v390 = vlaneseq
    %v391 = vshrl.u32 %v390, 7
    %v392 = vsub.s32 0, %v391
    %v393 = vrot.slane %v388, %v392
    %v394 = vlaneseq
    %v395 = vshrl.u32 %v394, 7
    %v396 = vsub.s32 1, %v395
    %v397 = vrot.slane %v388, %v396
    %v398 = vlaneseq
    %v399 = vshrl.u32 %v398, 7
    %v400 = vsub.s32 2, %v399
    %v401 = vrot.slane %v388, %v400
    %v402 = vlaneseq
    %v403 = vshrl.u32 %v402, 7
    %v404 = vsub.s32 3, %v403
    %v405 = vrot.slane %v388, %v404
    %v410 = vmul.f32 %v386, %v393
    %v411 = vmul.f32 %v385, %v397
    %v412 = vmul.f32 %v384, %v401
    %v413 = vmul.f32 %v383, %v405
    %v414 = vadd.f32 %v358, %v410
    %v415 = vadd.f32 %v359, %v411
    %v416 = vadd.f32 %v360, %v412
    %v417 = vadd.f32 %v361, %v413
    %418 = vrot.lane.b32.xlu0 %v234, 15
    %v419 = vpop.permute.xlu0 %418
    %420 = vrot.lane.b32.xlu0 %v236, 15
    %v421 = vpop.permute.xlu0 %420
    %422 = vrot.lane.b32.xlu0 %v295, 15
    %v423 = vpop.permute.xlu0 %422
    %424 = vrot.lane.b32.xlu0 %v297, 15
    %v425 = vpop.permute.xlu0 %424
    %vm426 = vcmp.lt.s32.totalorder %v326, 15
    %v427 = vsel %vm426, %v423, %v425
    %v428 = vsel %vm426, %v421, %v423
    %v429 = vsel %vm426, %v419, %v421
    %v430 = vsel %vm426, %v425, %v419
    %s431 = scalar_lea.vmem %s5, 2
    %v432 = vld [vmem:[%s431] ss:$8 sm:$0xf]
    %v434 = vlaneseq
    %v435 = vshrl.u32 %v434, 7
    %v436 = vsub.s32 0, %v435
    %v437 = vrot.slane %v432, %v436
    %v438 = vlaneseq
    %v439 = vshrl.u32 %v438, 7
    %v440 = vsub.s32 1, %v439
    %v441 = vrot.slane %v432, %v440
    %v442 = vlaneseq
    %v443 = vshrl.u32 %v442, 7
    %v444 = vsub.s32 2, %v443
    %v445 = vrot.slane %v432, %v444
    %v446 = vlaneseq
    %v447 = vshrl.u32 %v446, 7
    %v448 = vsub.s32 3, %v447
    %v449 = vrot.slane %v432, %v448
    %v454 = vmul.f32 %v430, %v437
    %v455 = vmul.f32 %v429, %v441
    %v456 = vmul.f32 %v428, %v445
    %v457 = vmul.f32 %v427, %v449
    %v458 = vadd.f32 %v414, %v454
    %v459 = vadd.f32 %v415, %v455
    %v460 = vadd.f32 %v416, %v456
    %v461 = vadd.f32 %v417, %v457
    %v466 = vrot.slane %v234, 4
    %v467 = vrot.slane %v236, 4
    %v468 = vrot.slane %v295, 4
    %v469 = vrot.slane %v297, 4
    %474 = vrot.lane.b32.xlu0 %v466, 1
    %v475 = vpop.permute.xlu0 %474
    %476 = vrot.lane.b32.xlu0 %v467, 1
    %v477 = vpop.permute.xlu0 %476
    %478 = vrot.lane.b32.xlu0 %v468, 1
    %v479 = vpop.permute.xlu0 %478
    %480 = vrot.lane.b32.xlu0 %v469, 1
    %v481 = vpop.permute.xlu0 %480
    %vm482 = vcmp.lt.s32.totalorder %v326, 1
    %v483 = vsel %vm482, %v479, %v481
    %v484 = vsel %vm482, %v477, %v479
    %v485 = vsel %vm482, %v475, %v477
    %v486 = vsel %vm482, %v481, %v475
    %s487 = scalar_lea.vmem %s5, 3
    %v488 = vld [vmem:[%s487] ss:$8 sm:$0xf]
    %v490 = vlaneseq
    %v491 = vshrl.u32 %v490, 7
    %v492 = vsub.s32 0, %v491
    %v493 = vrot.slane %v488, %v492
    %v494 = vlaneseq
    %v495 = vshrl.u32 %v494, 7
    %v496 = vsub.s32 1, %v495
    %v497 = vrot.slane %v488, %v496
    %v498 = vlaneseq
    %v499 = vshrl.u32 %v498, 7
    %v500 = vsub.s32 2, %v499
    %v501 = vrot.slane %v488, %v500
    %v502 = vlaneseq
    %v503 = vshrl.u32 %v502, 7
    %v504 = vsub.s32 3, %v503
    %v505 = vrot.slane %v488, %v504
    %v510 = vmul.f32 %v486, %v493
    %v511 = vmul.f32 %v485, %v497
    %v512 = vmul.f32 %v484, %v501
    %v513 = vmul.f32 %v483, %v505
    %v514 = vadd.f32 %v458, %v510
    %v515 = vadd.f32 %v459, %v511
    %v516 = vadd.f32 %v460, %v512
    %v517 = vadd.f32 %v461, %v513
    %v518 = vadd.f32 %v514, %v240
    %v519 = vadd.f32 %v515, %v242
    %v520 = vadd.f32 %v516, %v301
    %v521 = vadd.f32 %v517, %v303
    %v526 = vrot.slane %v240, 4
    %v527 = vrot.slane %v242, 4
    %v528 = vrot.slane %v301, 4
    %v529 = vrot.slane %v303, 4
    %534 = vrot.lane.b32.xlu0 %v526, 127
    %v535 = vpop.permute.xlu0 %534
    %536 = vrot.lane.b32.xlu0 %v527, 127
    %v537 = vpop.permute.xlu0 %536
    %538 = vrot.lane.b32.xlu0 %v528, 127
    %v539 = vpop.permute.xlu0 %538
    %540 = vrot.lane.b32.xlu0 %v529, 127
    %v541 = vpop.permute.xlu0 %540
    %vm542 = vcmp.lt.s32.totalorder %v326, 127
    %v543 = vsel %vm542, %v539, %v541
    %v544 = vsel %vm542, %v537, %v539
    %v545 = vsel %vm542, %v535, %v537
    %v546 = vsel %vm542, %v541, %v535
    %s547 = scalar_lea.vmem %s5, 5
    %v548 = vld [vmem:[%s547] ss:$8 sm:$0xf]
    %v550 = vlaneseq
    %v551 = vshrl.u32 %v550, 7
    %v552 = vsub.s32 0, %v551
    %v553 = vrot.slane %v548, %v552
    %v554 = vlaneseq
    %v555 = vshrl.u32 %v554, 7
    %v556 = vsub.s32 1, %v555
    %v557 = vrot.slane %v548, %v556
    %v558 = vlaneseq
    %v559 = vshrl.u32 %v558, 7
    %v560 = vsub.s32 2, %v559
    %v561 = vrot.slane %v548, %v560
    %v562 = vlaneseq
    %v563 = vshrl.u32 %v562, 7
    %v564 = vsub.s32 3, %v563
    %v565 = vrot.slane %v548, %v564
    %v570 = vmul.f32 %v545, %v553
    %v571 = vmul.f32 %v544, %v557
    %v572 = vmul.f32 %v543, %v561
    %v573 = vmul.f32 %v546, %v565
    %v574 = vadd.f32 %v518, %v570
    %v575 = vadd.f32 %v519, %v571
    %v576 = vadd.f32 %v520, %v572
    %v577 = vadd.f32 %v521, %v573
    %578 = vrot.lane.b32.xlu0 %v244, 113
    %v579 = vpop.permute.xlu0 %578
    %580 = vrot.lane.b32.xlu0 %v246, 113
    %v581 = vpop.permute.xlu0 %580
    %582 = vrot.lane.b32.xlu0 %v305, 113
    %v583 = vpop.permute.xlu0 %582
    %584 = vrot.lane.b32.xlu0 %v307, 113
    %v585 = vpop.permute.xlu0 %584
    %vm586 = vcmp.lt.s32.totalorder %v326, 113
    %v587 = vsel %vm586, %v583, %v585
    %v588 = vsel %vm586, %v581, %v583
    %v589 = vsel %vm586, %v579, %v581
    %v590 = vsel %vm586, %v585, %v579
    %s591 = scalar_lea.vmem %s5, 6
    %v592 = vld [vmem:[%s591] ss:$8 sm:$0xf]
    %v594 = vlaneseq
    %v595 = vshrl.u32 %v594, 7
    %v596 = vsub.s32 0, %v595
    %v597 = vrot.slane %v592, %v596
    %v598 = vlaneseq
    %v599 = vshrl.u32 %v598, 7
    %v600 = vsub.s32 1, %v599
    %v601 = vrot.slane %v592, %v600
    %v602 = vlaneseq
    %v603 = vshrl.u32 %v602, 7
    %v604 = vsub.s32 2, %v603
    %v605 = vrot.slane %v592, %v604
    %v606 = vlaneseq
    %v607 = vshrl.u32 %v606, 7
    %v608 = vsub.s32 3, %v607
    %v609 = vrot.slane %v592, %v608
    %v614 = vmul.f32 %v589, %v597
    %v615 = vmul.f32 %v588, %v601
    %v616 = vmul.f32 %v587, %v605
    %v617 = vmul.f32 %v590, %v609
    %v618 = vadd.f32 %v574, %v614
    %v619 = vadd.f32 %v575, %v615
    %v620 = vadd.f32 %v576, %v616
    %v621 = vadd.f32 %v577, %v617
    %v626 = vrot.slane %v244, 4
    %v627 = vrot.slane %v246, 4
    %v628 = vrot.slane %v305, 4
    %v629 = vrot.slane %v307, 4
    %634 = vrot.lane.b32.xlu0 %v626, 112
    %v635 = vpop.permute.xlu0 %634
    %636 = vrot.lane.b32.xlu0 %v627, 112
    %v637 = vpop.permute.xlu0 %636
    %638 = vrot.lane.b32.xlu0 %v628, 112
    %v639 = vpop.permute.xlu0 %638
    %640 = vrot.lane.b32.xlu0 %v629, 112
    %v641 = vpop.permute.xlu0 %640
    %vm642 = vcmp.lt.s32.totalorder %v326, 112
    %v643 = vsel %vm642, %v639, %v641
    %v644 = vsel %vm642, %v637, %v639
    %v645 = vsel %vm642, %v635, %v637
    %v646 = vsel %vm642, %v641, %v635
    %s647 = scalar_lea.vmem %s5, 7
    %v648 = vld [vmem:[%s647] ss:$8 sm:$0xf]
    %v650 = vlaneseq
    %v651 = vshrl.u32 %v650, 7
    %v652 = vsub.s32 0, %v651
    %v653 = vrot.slane %v648, %v652
    %v654 = vlaneseq
    %v655 = vshrl.u32 %v654, 7
    %v656 = vsub.s32 1, %v655
    %v657 = vrot.slane %v648, %v656
    %v658 = vlaneseq
    %v659 = vshrl.u32 %v658, 7
    %v660 = vsub.s32 2, %v659
    %v661 = vrot.slane %v648, %v660
    %v662 = vlaneseq
    %v663 = vshrl.u32 %v662, 7
    %v664 = vsub.s32 3, %v663
    %v665 = vrot.slane %v648, %v664
    %v670 = vmul.f32 %v645, %v653
    %v671 = vmul.f32 %v644, %v657
    %v672 = vmul.f32 %v643, %v661
    %v673 = vmul.f32 %v646, %v665
    %v674 = vadd.f32 %v618, %v670
    %v675 = vadd.f32 %v619, %v671
    %v676 = vadd.f32 %v620, %v672
    %v677 = vadd.f32 %v621, %v673
    %678 = vrot.lane.b32.xlu0 %v250, 111
    %v679 = vpop.permute.xlu0 %678
    %680 = vrot.lane.b32.xlu0 %v252, 111
    %v681 = vpop.permute.xlu0 %680
    %682 = vrot.lane.b32.xlu0 %v311, 111
    %v683 = vpop.permute.xlu0 %682
    %684 = vrot.lane.b32.xlu0 %v313, 111
    %v685 = vpop.permute.xlu0 %684
    %vm686 = vcmp.lt.s32.totalorder %v326, 111
    %v687 = vsel %vm686, %v683, %v685
    %v688 = vsel %vm686, %v681, %v683
    %v689 = vsel %vm686, %v679, %v681
    %v690 = vsel %vm686, %v685, %v679
    %s691 = scalar_lea.vmem %s5, 32
    %v692 = vld [vmem:[%s691] ss:$8 sm:$0xf]
    %v694 = vlaneseq
    %v695 = vshrl.u32 %v694, 7
    %v696 = vsub.s32 0, %v695
    %v697 = vrot.slane %v692, %v696
    %v698 = vlaneseq
    %v699 = vshrl.u32 %v698, 7
    %v700 = vsub.s32 1, %v699
    %v701 = vrot.slane %v692, %v700
    %v702 = vlaneseq
    %v703 = vshrl.u32 %v702, 7
    %v704 = vsub.s32 2, %v703
    %v705 = vrot.slane %v692, %v704
    %v706 = vlaneseq
    %v707 = vshrl.u32 %v706, 7
    %v708 = vsub.s32 3, %v707
    %v709 = vrot.slane %v692, %v708
    %v714 = vmul.f32 %v689, %v697
    %v715 = vmul.f32 %v688, %v701
    %v716 = vmul.f32 %v687, %v705
    %v717 = vmul.f32 %v690, %v709
    %v718 = vadd.f32 %v674, %v714
    %v719 = vadd.f32 %v675, %v715
    %v720 = vadd.f32 %v676, %v716
    %v721 = vadd.f32 %v677, %v717
    %722 = vset.pattern.permute.xlu0 1
    %723 = vperm.xlu0 %722, %v47
    %v724 = vpop.permute.xlu0 %723
    %v726 = vadd.f32 %v718, %v724
    %v727 = vadd.f32 %v719, %v724
    %v728 = vadd.f32 %v720, %v724
    %v729 = vadd.f32 %v721, %v724
    %v730 = vmax.f32 %v726, 0.0
    %v731 = vmax.f32 %v727, 0.0
    %v732 = vmax.f32 %v728, 0.0
    %v733 = vmax.f32 %v729, 0.0
    %v734 = vld [vmem:[%s3] sm:$0xf]
    %v735 = vld [vmem:[%s3 + $0x4] sm:$0xf]
    %v736 = vpack.c.bf16 %v730, %v730
    %v737 = vpack.c.bf16 %v731, %v731
    %v738 = vpack.c.bf16 %v732, %v732
    %v739 = vpack.c.bf16 %v733, %v733
    %741 = vset.pattern.permute.xlu0 2
    %742 = vperm.xlu0 %741, %v48
    %v743 = vpop.permute.xlu0 %742
    %746 = vset.pattern.permute.xlu0 2
    %747 = vperm.xlu0 %746, %v49
    %v748 = vpop.permute.xlu0 %747
    %v752 = vunpack.c.l.b16 %v734
    %v753 = vunpack.c.l.b16 %v735
    %v754 = vpack.c.b16 %v753, %v752
    %v756 = vsel %vm172, %v754, 0
    %v759 = vsel %vm182, %v736, 0
    %v762 = vsel %vm182, %v737, 0
    %v765 = vsel %vm182, %v738, 0
    %v768 = vsel %vm182, %v739, 0
    %770 = vmatprep.subr.bf16.mxu0 %v762
    %771 = vmatpush1.bf16.msra.mxu0 %v759
    %772 = vmatprep.subr.bf16.mxu0 0
    %773 = vmatpush1.bf16.msra.mxu0 0
    %774 = vmatprep.subr.bf16.mxu0 0
    %775 = vmatpush1.bf16.msra.mxu0 0
    %776 = vmatprep.subr.bf16.mxu0 0
    %777 = vmatpush1.bf16.msra.mxu0 0
    %778 = vmatprep.subr.bf16.mxu0 0
    %779 = vmatpush1.bf16.msra.mxu0 0
    %780 = vmatprep.subr.bf16.mxu0 0
    %781 = vmatpush1.bf16.msra.mxu0 0
    %782 = vmatprep.subr.bf16.mxu0 0
    %783 = vmatpush1.bf16.msra.mxu0 0
    %784 = vmatprep.subr.bf16.mxu0 0
    %785 = vmatpush1.bf16.msra.mxu0 0
    %786 = vmatprep.subr.bf16.mxu0 0
    %787 = vmatpush1.bf16.msra.mxu0 0
    %788 = vmatprep.subr.bf16.mxu0 0
    %789 = vmatpush1.bf16.msra.mxu0 0
    %790 = vmatprep.subr.bf16.mxu0 0
    %791 = vmatpush1.bf16.msra.mxu0 0
    %792 = vmatprep.subr.bf16.mxu0 0
    %793 = vmatpush1.bf16.msra.mxu0 0
    %794 = vmatprep.subr.bf16.mxu0 0
    %795 = vmatpush1.bf16.msra.mxu0 0
    %796 = vmatprep.subr.bf16.mxu0 0
    %797 = vmatpush1.bf16.msra.mxu0 0
    %798 = vmatprep.subr.bf16.mxu0 0
    %799 = vmatpush1.bf16.msra.mxu0 0
    %800 = vmatprep.subr.bf16.mxu0 0
    %801 = vmatpush1.bf16.msra.mxu0 0
    %802 = vmatprep.mubr.bf16.mxu0 0
    %803 = vmatmul.mubr.bf16.gmra.mrb[0].mxu0 %v756
    %v804 = vpop.f32.mrb[0].mxu0
    %v805 = vadd.f32 %v743, %v804
    %v806 = vpop.f32.mrb[0].mxu0
    %v807 = vadd.f32 %v743, %v806
    %v808 = vpop.f32.mrb[0].mxu0
    %v809 = vadd.f32 %v748, %v808
    %v810 = vpop.f32.mrb[0].mxu0
    %v811 = vadd.f32 %v748, %v810
    %812 = vdwg.mxu0
    %813 = vmatprep.subr.bf16.mxu0 %v768
    %814 = vmatpush1.bf16.msra.mxu0 %v765
    %815 = vmatprep.subr.bf16.mxu0 0
    %816 = vmatpush1.bf16.msra.mxu0 0
    %817 = vmatprep.subr.bf16.mxu0 0
    %818 = vmatpush1.bf16.msra.mxu0 0
    %819 = vmatprep.subr.bf16.mxu0 0
    %820 = vmatpush1.bf16.msra.mxu0 0
    %821 = vmatprep.subr.bf16.mxu0 0
    %822 = vmatpush1.bf16.msra.mxu0 0
    %823 = vmatprep.subr.bf16.mxu0 0
    %824 = vmatpush1.bf16.msra.mxu0 0
    %825 = vmatprep.subr.bf16.mxu0 0
    %826 = vmatpush1.bf16.msra.mxu0 0
    %827 = vmatprep.subr.bf16.mxu0 0
    %828 = vmatpush1.bf16.msra.mxu0 0
    %829 = vmatprep.subr.bf16.mxu0 0
    %830 = vmatpush1.bf16.msra.mxu0 0
    %831 = vmatprep.subr.bf16.mxu0 0
    %832 = vmatpush1.bf16.msra.mxu0 0
    %833 = vmatprep.subr.bf16.mxu0 0
    %834 = vmatpush1.bf16.msra.mxu0 0
    %835 = vmatprep.subr.bf16.mxu0 0
    %836 = vmatpush1.bf16.msra.mxu0 0
    %837 = vmatprep.subr.bf16.mxu0 0
    %838 = vmatpush1.bf16.msra.mxu0 0
    %839 = vmatprep.subr.bf16.mxu0 0
    %840 = vmatpush1.bf16.msra.mxu0 0
    %841 = vmatprep.subr.bf16.mxu0 0
    %842 = vmatpush1.bf16.msra.mxu0 0
    %843 = vmatprep.subr.bf16.mxu0 0
    %844 = vmatpush1.bf16.msra.mxu0 0
    %845 = vmatprep.mubr.bf16.mxu0 0
    %846 = vmatmul.mubr.bf16.gmra.mrb[0].mxu0 %v756
    %v847 = vpop.f32.mrb[0].mxu0
    %v848 = vadd.f32 %v743, %v847
    %v849 = vpop.f32.mrb[0].mxu0
    %v850 = vadd.f32 %v743, %v849
    %v851 = vpop.f32.mrb[0].mxu0
    %v852 = vadd.f32 %v748, %v851
    %v853 = vpop.f32.mrb[0].mxu0
    %v854 = vadd.f32 %v748, %v853
    %855 = vdwg.mxu0
    %v856 = vadd.f32 %v805, %v39
    %v857 = vadd.f32 %v807, %v40
    %v858 = vadd.f32 %v848, %v41
    %v859 = vadd.f32 %v850, %v42
    %v860 = vadd.f32 %v809, %v43
    %v861 = vadd.f32 %v811, %v44
    %v862 = vadd.f32 %v852, %v45
    %v863 = vadd.f32 %v854, %v46
    %v864 = vmax.f32 %v856, 0.0
    %v865 = vmax.f32 %v857, 0.0
    %v866 = vmax.f32 %v858, 0.0
    %v867 = vmax.f32 %v859, 0.0
    %v868 = vmax.f32 %v860, 0.0
    %v869 = vmax.f32 %v861, 0.0
    %v870 = vmax.f32 %v862, 0.0
    %v871 = vmax.f32 %v863, 0.0
    %872 = vst [vmem:[#allocation5] sm:$0xff] %v864
    %873 = vst [vmem:[#allocation5 + $0x8] sm:$0xff] %v865
    %874 = vst [vmem:[#allocation5 + $0x10] sm:$0xff] %v866
    %875 = vst [vmem:[#allocation5 + $0x18] sm:$0xff] %v867
    %876 = vst [vmem:[#allocation5 + $0x20] sm:$0xff] %v868
    %877 = vst [vmem:[#allocation5 + $0x28] sm:$0xff] %v869
    %878 = vst [vmem:[#allocation5 + $0x30] sm:$0xff] %v870
    %879 = vst [vmem:[#allocation5 + $0x38] sm:$0xff] %v871
    // Predicated region
    $region30: #{tpu_custom_call.1} parent=1 // pred_check
      _
    $region31: #{tpu_custom_call.1} parent=1 // pred_check_branch
      %881 = sbr.rel (0) target = $region33
    $region32: #{tpu_custom_call.1} parent=1 // pred_region
      %s883 = ssub.s32 1024, 1024
      %884 = vsyncadd [#allocation4], %s883
      %s885 = sshll.u32 [#allocation5], 4
      %s886 = int_to_ptr.vmem [resolvable:$true] %s885
      %891 = dma.vmem_to_hbm [thread:$0]  %s886, 1024, %s6, [#allocation4], 512, 512, 32
    $region33: #{tpu_custom_call.1} parent=1 // pred_fallthru
      _
    // Predicated region
    $region34: #{tpu_custom_call.1} parent=1 // pred_check
      _
    $region35: #{tpu_custom_call.1} parent=1 // pred_check_branch
      %893 = sbr.rel (0) target = $region37
    $region36: #{tpu_custom_call.1} parent=1 // pred_region
      %894 = dma.done [#allocation4], 1024
    $region37: #{tpu_custom_call.1} parent=1 // pred_fallthru
      _
    %895 = vsyncpa [#allocation3], 1
    %896 = vsyncpa [#allocation4], 1

</llo_original>
